<compile_context>
chip_gen: v7x
topology: tpu7x:2x2x1
jax: 0.10.0
libtpu: 0.0.40
codegen_flags: <defaults>
</compile_context>

<pallas_src>
import jax
import jax.numpy as jnp
from jax.experimental import pallas as pl
from jax.experimental.pallas import tpu as pltpu


def xor_kernel(params_ref, x_ref, o_ref):
    # params_ref (SMEM, f32[9]):
    #   [0..3] = w1 row-major (PyTorch [out, in]) -> w1[0,0], w1[0,1], w1[1,0], w1[1,1]
    #   [4..5] = b1
    #   [6..7] = w2[0, :]
    #   [8]    = b2[0]
    x0 = x_ref[:, 0:1]                       # (B, 1) f32
    x1 = x_ref[:, 1:2]                       # (B, 1) f32

    w1_00 = params_ref[0]
    w1_01 = params_ref[1]
    w1_10 = params_ref[2]
    w1_11 = params_ref[3]
    b1_0 = params_ref[4]
    b1_1 = params_ref[5]
    w2_00 = params_ref[6]
    w2_01 = params_ref[7]
    b2_0 = params_ref[8]

    # fc1 unrolled on the VPU (no MXU, no transpose).
    z0 = x0 * w1_00 + x1 * w1_01 + b1_0      # hidden unit 0, (B, 1)
    z1 = x0 * w1_10 + x1 * w1_11 + b1_1      # hidden unit 1, (B, 1)

    # sigmoid(z) = 1 / (1 + exp(-z)); exp on EUP, approx reciprocal on EUP.
    h0 = pl.reciprocal(1.0 + jnp.exp(-z0), approx=True)
    h1 = pl.reciprocal(1.0 + jnp.exp(-z1), approx=True)

    # fc2 unrolled on the VPU.
    y = h0 * w2_00 + h1 * w2_01 + b2_0       # (B, 1)
    o_ref[...] = y.astype(o_ref.dtype)


def xor_forward(x, w1, b1, w2, b2):
    """x: (B, 2) f32; weights follow PyTorch nn.Linear convention W[out, in]."""
    B = x.shape[0]
    params = jnp.concatenate(
        [w1.reshape(-1), b1.reshape(-1), w2.reshape(-1), b2.reshape(-1)]
    ).astype(jnp.float32)                    # (9,) flat scalar parameters

    return pl.pallas_call(
        xor_kernel,
        out_shape=jax.ShapeDtypeStruct((B, 1), jnp.float32),
        in_specs=[
            pl.BlockSpec(memory_space=pltpu.SMEM),   # params (9,) scalars
            pl.BlockSpec(memory_space=pltpu.VMEM),   # x      (B, 2)
        ],
        out_specs=pl.BlockSpec(memory_space=pltpu.VMEM),
    )(params, x)


if __name__ == "__main__":
    # XOR truth-table inputs, same as the PyTorch test script.
    x = jnp.array([[0.0, 0.0], [0.0, 1.0], [1.0, 0.0], [1.0, 1.0]],
                  dtype=jnp.float32)

    # Deterministic parameter init (PyTorch nn.Linear shapes: W[out,in], b[out]).
    key = jax.random.PRNGKey(0)
    k1, k2, k3, k4 = jax.random.split(key, 4)
    w1 = jax.random.uniform(k1, (2, 2), jnp.float32, minval=-0.5, maxval=0.5)
    b1 = jax.random.uniform(k2, (2,), jnp.float32, minval=-0.5, maxval=0.5)
    w2 = jax.random.uniform(k3, (1, 2), jnp.float32, minval=-0.5, maxval=0.5)
    b2 = jax.random.uniform(k4, (1,), jnp.float32, minval=-0.5, maxval=0.5)

    out = xor_forward(x, w1, b1, w2, b2)
    out = jax.block_until_ready(out)

    # Pure-JAX reference check (tolerance accounts for approx EUP reciprocal).
    ref_h = jax.nn.sigmoid(x @ w1.T + b1)
    ref = ref_h @ w2.T + b2
    assert out.shape == (4, 1)
    assert jnp.allclose(out, ref, atol=1e-3, rtol=1e-3), (out, ref)

    print("KERNEL_OK")
</pallas_src>

<mosaic_0001>
module attributes {stable_mosaic.version = 11 : i64} {
  func.func @xor_kernel(%arg0: memref<9xf32, #tpu.memory_space<smem>>, %arg1: memref<4x2xf32, #tpu.memory_space<vmem>>, %arg2: memref<4x1xf32, #tpu.memory_space<vmem>>) attributes {dimension_semantics = [], scalar_prefetch = 0 : i64, scratch_operands = 0 : i64, tpu.core_type = #tpu.core_type<tc>} {
    %c0 = arith.constant 0 : index
    %c0_0 = arith.constant 0 : index
    %0 = vector.load %arg1[%c0, %c0_0] : memref<4x2xf32, #tpu.memory_space<vmem>>, vector<4x1xf32>
    %c0_1 = arith.constant 0 : index
    %c1 = arith.constant 1 : index
    %1 = vector.load %arg1[%c0_1, %c1] : memref<4x2xf32, #tpu.memory_space<vmem>>, vector<4x1xf32>
    %c0_2 = arith.constant 0 : index
    %2 = memref.load %arg0[%c0_2] : memref<9xf32, #tpu.memory_space<smem>>
    %c1_3 = arith.constant 1 : index
    %3 = memref.load %arg0[%c1_3] : memref<9xf32, #tpu.memory_space<smem>>
    %c2 = arith.constant 2 : index
    %4 = memref.load %arg0[%c2] : memref<9xf32, #tpu.memory_space<smem>>
    %c3 = arith.constant 3 : index
    %5 = memref.load %arg0[%c3] : memref<9xf32, #tpu.memory_space<smem>>
    %c4 = arith.constant 4 : index
    %6 = memref.load %arg0[%c4] : memref<9xf32, #tpu.memory_space<smem>>
    %c5 = arith.constant 5 : index
    %7 = memref.load %arg0[%c5] : memref<9xf32, #tpu.memory_space<smem>>
    %c6 = arith.constant 6 : index
    %8 = memref.load %arg0[%c6] : memref<9xf32, #tpu.memory_space<smem>>
    %c7 = arith.constant 7 : index
    %9 = memref.load %arg0[%c7] : memref<9xf32, #tpu.memory_space<smem>>
    %c8 = arith.constant 8 : index
    %10 = memref.load %arg0[%c8] : memref<9xf32, #tpu.memory_space<smem>>
    %11 = vector.broadcast %2 : f32 to vector<4x1xf32>
    %12 = arith.mulf %0, %11 : vector<4x1xf32>
    %13 = vector.broadcast %3 : f32 to vector<4x1xf32>
    %14 = arith.mulf %1, %13 : vector<4x1xf32>
    %15 = arith.addf %12, %14 : vector<4x1xf32>
    %16 = vector.broadcast %6 : f32 to vector<4x1xf32>
    %17 = arith.addf %15, %16 : vector<4x1xf32>
    %18 = vector.broadcast %4 : f32 to vector<4x1xf32>
    %19 = arith.mulf %0, %18 : vector<4x1xf32>
    %20 = vector.broadcast %5 : f32 to vector<4x1xf32>
    %21 = arith.mulf %1, %20 : vector<4x1xf32>
    %22 = arith.addf %19, %21 : vector<4x1xf32>
    %23 = vector.broadcast %7 : f32 to vector<4x1xf32>
    %24 = arith.addf %22, %23 : vector<4x1xf32>
    %cst = arith.constant 0.000000e+00 : f32
    %25 = vector.broadcast %cst : f32 to vector<4x1xf32>
    %26 = arith.subf %25, %17 : vector<4x1xf32>
    %27 = math.exp %26 : vector<4x1xf32>
    %cst_4 = arith.constant 1.000000e+00 : f32
    %28 = vector.broadcast %cst_4 : f32 to vector<4x1xf32>
    %29 = arith.addf %28, %27 : vector<4x1xf32>
    %30 = tpu.reciprocal %29 {approx = true} : vector<4x1xf32> -> vector<4x1xf32>
    %cst_5 = arith.constant 0.000000e+00 : f32
    %31 = vector.broadcast %cst_5 : f32 to vector<4x1xf32>
    %32 = arith.subf %31, %24 : vector<4x1xf32>
    %33 = math.exp %32 : vector<4x1xf32>
    %cst_6 = arith.constant 1.000000e+00 : f32
    %34 = vector.broadcast %cst_6 : f32 to vector<4x1xf32>
    %35 = arith.addf %34, %33 : vector<4x1xf32>
    %36 = tpu.reciprocal %35 {approx = true} : vector<4x1xf32> -> vector<4x1xf32>
    %37 = vector.broadcast %8 : f32 to vector<4x1xf32>
    %38 = arith.mulf %30, %37 : vector<4x1xf32>
    %39 = vector.broadcast %9 : f32 to vector<4x1xf32>
    %40 = arith.mulf %36, %39 : vector<4x1xf32>
    %41 = arith.addf %38, %40 : vector<4x1xf32>
    %42 = vector.broadcast %10 : f32 to vector<4x1xf32>
    %43 = arith.addf %41, %42 : vector<4x1xf32>
    %c0_7 = arith.constant 0 : index
    %c0_8 = arith.constant 0 : index
    %44 = vector.load %arg2[%c0_7, %c0_8] : memref<4x1xf32, #tpu.memory_space<vmem>>, vector<4x1xf32>
    tpu.vector_store %arg2[%c0_7, %c0_8], %43 {strides = array<i32>} : memref<4x1xf32, #tpu.memory_space<vmem>>, vector<4x1xf32>,
    return
  }
}

</mosaic_0001>

<llo_original>
// kernel: tpu_custom_call.1
$region0: #{tpu_custom_call.1}
  #allocation0 [shape = 'u32[]', space=smem, size = 0x4, offset = 0x4, fixed_abs, tag = 'smem constant byte address 0x4 - core index']
  #allocation1 [shape = 'u32[144,128]{1,0:T(1,128)}', space=vmem, size = 0x12000, scoped, tag = 'internal scratch']
  %s0 = inlined_call_operand.vmem [shape: f32[9], index: 0, kind: input, shape index: {}]
  %s1 = inlined_call_operand.vmem [shape: f32[4,2], index: 1, kind: input, shape index: {}]
  %s2 = inlined_call_operand.vmem [shape: f32[4,1], index: 2, kind: output, shape index: {}]
  %s3 = sld [smem:[#allocation0]]
  $region22: #{tpu_custom_call.1} parent=0
    _
  %s5 = ssub.s32 1, %s3
  %s6 = scalar_select 0, %s5, %s3
  $region1: #{tpu_custom_call.1} parent=0
    #allocation2 [shape = 'u8[512]{0}', space=smem, size = 0x200, scoped, tag = 'input window, operand 0, single buffered']
    #allocation3 [shape = 's32[1]{0}', space=sflag, size = 0x4, scoped, tag = 'scoped memory for tpu_custom_call.1']
    %7 = vsyncpa [#allocation3], 0
    // Predicated region
    $region2: #{tpu_custom_call.1} parent=1 // pred_check
      _
    $region3: #{tpu_custom_call.1} parent=1 // pred_check_branch
      %9 = sbr.rel (0) target = $region5
    $region4: #{tpu_custom_call.1} parent=1 // pred_region
      %s11 = ssub.s32 16, 16
      %12 = vsyncadd [#allocation3], %s11
      %s14 = sshll.u32 %s0, 4
      %s15 = int_to_ptr.vmem [resolvable:$true] %s14
      %17 = dma.vmem_to_smem %s15, 16, [#allocation2], [#allocation3]
    $region5: #{tpu_custom_call.1} parent=1 // pred_fallthru
      _
    // Predicated region
    $region6: #{tpu_custom_call.1} parent=1 // pred_check
      _
    $region7: #{tpu_custom_call.1} parent=1 // pred_check_branch
      %19 = sbr.rel (0) target = $region9
    $region8: #{tpu_custom_call.1} parent=1 // pred_region
      _
    $region9: #{tpu_custom_call.1} parent=1 // pred_fallthru
      _
    // Predicated region
    $region10: #{tpu_custom_call.1} parent=1 // pred_check
      _
    $region11: #{tpu_custom_call.1} parent=1 // pred_check_branch
      %21 = sbr.rel (0) target = $region13
    $region12: #{tpu_custom_call.1} parent=1 // pred_region
      %22 = dma.done [#allocation3], 16
    $region13: #{tpu_custom_call.1} parent=1 // pred_fallthru
      _
    %23 = sfence
    %v24 = vld [vmem:[%s1] sm:$0xf]
    %s25 = sld [smem:[#allocation2]]
    %s26 = sld [smem:[#allocation2 + $0x1]]
    %s27 = sld [smem:[#allocation2 + $0x2]]
    %s28 = sld [smem:[#allocation2 + $0x3]]
    %s29 = sld [smem:[#allocation2 + $0x4]]
    %s30 = sld [smem:[#allocation2 + $0x5]]
    %s31 = sld [smem:[#allocation2 + $0x6]]
    %s32 = sld [smem:[#allocation2 + $0x7]]
    %s33 = sld [smem:[#allocation2 + $0x8]]
    %v34 = vstv %s25
    %v35 = vmul.f32 %v24, %v34
    %v36 = vstv %s26
    %v37 = vmul.f32 %v24, %v36
    %39 = vrot.lane.b32.xlu0 %v37, 127
    %v40 = vpop.permute.xlu0 %39
    %v42 = vadd.f32 %v35, %v40
    %v43 = vstv %s29
    %v44 = vadd.f32 %v42, %v43
    %v45 = vstv %s27
    %v46 = vmul.f32 %v24, %v45
    %v47 = vstv %s28
    %v48 = vmul.f32 %v24, %v47
    %50 = vrot.lane.b32.xlu0 %v48, 127
    %v51 = vpop.permute.xlu0 %50
    %v53 = vadd.f32 %v46, %v51
    %v54 = vstv %s30
    %v55 = vadd.f32 %v53, %v54
    %v56 = vsub.f32 0.0, %v44
    %v57 = vmul.f32 %v56, 1.442695
    %v58 = vpow.pop %v57
    %v59 = vadd.f32 %v58, 1.0
    %v60 = vrcp.pop %v59
    %v61 = vsub.f32 0.0, %v55
    %v62 = vmul.f32 %v61, 1.442695
    %v63 = vpow.pop %v62
    %v64 = vadd.f32 %v63, 1.0
    %v65 = vrcp.pop %v64
    %v66 = vstv %s31
    %v67 = vmul.f32 %v60, %v66
    %v68 = vstv %s32
    %v69 = vmul.f32 %v65, %v68
    %v70 = vadd.f32 %v67, %v69
    %v71 = vstv %s33
    %v72 = vadd.f32 %v70, %v71
    %vm73 = vcmask 3072
    %74 = vst.msk [vmem:[%s2] sm:$0xf] %vm73, %v72
    // Predicated region
    $region14: #{tpu_custom_call.1} parent=1 // pred_check
      _
    $region15: #{tpu_custom_call.1} parent=1 // pred_check_branch
      %76 = sbr.rel (0) target = $region17
    $region16: #{tpu_custom_call.1} parent=1 // pred_region
      _
    $region17: #{tpu_custom_call.1} parent=1 // pred_fallthru
      _
    // Predicated region
    $region18: #{tpu_custom_call.1} parent=1 // pred_check
      _
    $region19: #{tpu_custom_call.1} parent=1 // pred_check_branch
      %78 = sbr.rel (0) target = $region21
    $region20: #{tpu_custom_call.1} parent=1 // pred_region
      _
    $region21: #{tpu_custom_call.1} parent=1 // pred_fallthru
      _
    %79 = vsyncpa [#allocation3], 1

</llo_original>
